<compile_context>
chip_gen: v5e
topology: v5e:2x2
jax: 0.10.0
libtpu: 0.0.40
codegen_flags: <defaults>
</compile_context>

<pallas_src>
import math

import jax
import jax.numpy as jnp
from jax import lax
from jax.experimental import pallas as pl
from jax.experimental.pallas import tpu as pltpu

_MiB = 1024 * 1024


def _default_vmem_budgets():
    """Generation-aware (vmem_limit_bytes, vmem_budget_bytes).

    v5e/v6e have 128 MiB physical VMEM; v7x has 64 MiB. Fall back to the
    conservative v7x-safe numbers when the hardware can't be queried
    (e.g. interpret mode on CPU)."""
    cap = None
    try:
        cap = getattr(pltpu.get_tpu_info(), "vmem_capacity_bytes", None)
    except Exception:
        cap = None
    if cap is not None and cap >= 100 * _MiB:      # v5e / v6e (128 MiB physical)
        return 100 * _MiB, 64 * _MiB
    return 40 * _MiB, 28 * _MiB                    # v7x-safe default


def _largest_divisor_leq(n, cap):
    cap = max(1, min(n, cap))
    for d in range(cap, 0, -1):
        if n % d == 0:
            return d
    return 1


def _largest_divisor_leq_mult8(n, cap):
    cap = max(1, min(n, cap))
    for d in range(cap, 0, -1):
        if n % d == 0 and d % 8 == 0:
            return d
    return _largest_divisor_leq(n, cap)


def _unroll_for(n_iters):
    # short fixed trip counts: fully unroll for LLO scheduler visibility;
    # long loops: moderate unroll to bound code size.
    return True if n_iters <= 16 else 8


def _make_single_pass_kernel(true_c, k, chunk, n_chunks, use_beta):
    """Block layout: x (nb, HWk, k*true_c) with k spatial positions packed on lanes."""
    inv_mean = 1.0 / float(k * true_c)
    unroll = _unroll_for(n_chunks)

    def kernel(*refs):
        if use_beta:
            x_ref, gamma_ref, beta_ref, o_ref = refs
        else:
            x_ref, gamma_ref, o_ref = refs
        nb, _, ck = x_ref.shape

        # --- reduction: chunked sublane sum-of-squares, f32 accumulator only ---
        def reduce_body(i, acc):
            start = pl.multiple_of(i * chunk, chunk)
            xs = x_ref[:, pl.ds(start, chunk), :].astype(jnp.float32)
            return acc + jnp.sum(xs * xs, axis=1)

        sq = lax.fori_loop(0, n_chunks, reduce_body,
                           jnp.zeros((nb, ck), jnp.float32), unroll=unroll)

        # Fold the k packed spatial groups into per-channel totals (channel totals end
        # up replicated k times along the lane axis). Lane rolls run on the XLU slot.
        tot = sq
        for j in range(1, k):
            tot = tot + pltpu.roll(sq, shift=j * true_c, axis=1)

        gx = jnp.sqrt(tot)                                              # (nb, ck)
        denom = jnp.sum(gx, axis=1, keepdims=True) * inv_mean + 1e-6    # (nb, 1)
        nx = gx / denom
        scale = (gamma_ref[...].astype(jnp.float32) * nx + 1.0).astype(x_ref.dtype)
        if use_beta:
            beta = beta_ref[...].astype(x_ref.dtype)                    # (1, ck)

        # --- apply: chunked, in the native dtype ---
        def apply_body(i, carry):
            start = pl.multiple_of(i * chunk, chunk)
            xs = x_ref[:, pl.ds(start, chunk), :]
            y = scale[:, None, :] * xs
            if use_beta:
                y = y + beta[:, None, :]
            o_ref[:, pl.ds(start, chunk), :] = y.astype(o_ref.dtype)
            return carry

        lax.fori_loop(0, n_chunks, apply_body, 0, unroll=unroll)

    return kernel


def _make_reduce_kernel(true_c, k, chunk, n_chunks):
    """Two-pass path, pass 1: accumulate sum-of-squares over HW tiles, finalize scale."""
    inv_mean = 1.0 / float(k * true_c)
    unroll = _unroll_for(n_chunks)

    def kernel(x_ref, gamma_ref, scale_ref, acc_ref):
        t = pl.program_id(1)

        @pl.when(t == 0)
        def _():
            acc_ref[...] = jnp.zeros_like(acc_ref)

        def reduce_body(i, acc):
            start = pl.multiple_of(i * chunk, chunk)
            xs = x_ref[:, pl.ds(start, chunk), :].astype(jnp.float32)
            return acc + jnp.sum(xs * xs, axis=1)

        acc_ref[...] += lax.fori_loop(0, n_chunks, reduce_body,
                                      jnp.zeros(acc_ref.shape, jnp.float32),
                                      unroll=unroll)

        @pl.when(t == pl.num_programs(1) - 1)
        def _():
            sq = acc_ref[...]                                   # (1, ck)
            tot = sq
            for j in range(1, k):
                tot = tot + pltpu.roll(sq, shift=j * true_c, axis=1)
            gx = jnp.sqrt(tot)
            denom = jnp.sum(gx, axis=1, keepdims=True) * inv_mean + 1e-6
            sc = gamma_ref[...].astype(jnp.float32) * (gx / denom) + 1.0
            scale_ref[...] = sc[:, None, :]                     # (1, 1, ck)

    return kernel


def _make_apply_kernel(use_beta):
    """Two-pass path, pass 2: re-read x and apply the precomputed per-channel scale."""
    def kernel(*refs):
        if use_beta:
            x_ref, scale_ref, beta_ref, o_ref = refs
        else:
            x_ref, scale_ref, o_ref = refs
        s = scale_ref[...].astype(x_ref.dtype)                  # (1, 1, ck)
        y = s * x_ref[...]
        if use_beta:
            y = y + beta_ref[...].astype(x_ref.dtype)[:, None, :]
        o_ref[...] = y.astype(o_ref.dtype)
    return kernel


def grn_nhwc(x, gamma, beta=None, *, vmem_limit_bytes=None, vmem_budget_bytes=None):
    """GRN over an NHWC tensor. gamma/beta broadcastable to (1,1,1,C); beta=None => no bias."""
    N, H, W, C = x.shape
    HW = H * W
    use_beta = beta is not None

    limit_default, budget_default = _default_vmem_budgets()
    if vmem_limit_bytes is None:
        vmem_limit_bytes = limit_default
    if vmem_budget_bytes is None:
        vmem_budget_bytes = budget_default

    # Lane packing: fold k spatial positions so the lane dim (k*C) is 128-dense.
    k = 1
    if C % 128 != 0:
        k_req = 128 // math.gcd(C, 128)
        if HW % k_req == 0 and HW // k_req >= 8:
            k = k_req
        # TODO(synk): pad C up to a multiple of 128 when no packing factor divides H*W
        # (the k=1 fallback is correct but produces masked partial stores).
    HWk = HW // k
    Ck = k * C

    xr = x.reshape(N, HWk, Ck)                      # contiguous reshape: no HBM movement

    def tile_param(p):
        pr = jnp.reshape(p, (1, C))
        return jnp.tile(pr, (1, k)) if k > 1 else pr

    gamma_r = tile_param(gamma)
    beta_r = tile_param(beta) if use_beta else None

    itemsize = jnp.dtype(x.dtype).itemsize
    # Single-pass working set per sample: 2x double-buffered input block + 2x output
    # block (the reduction is chunked, so no block-sized f32 temp).
    per_sample_bytes = 4 * HWk * Ck * itemsize

    if per_sample_bytes <= vmem_budget_bytes:
        # -------------------------- single pass --------------------------
        nb_vmem = max(1, vmem_budget_bytes // per_sample_bytes)
        # Keep the grid at >= min(N, 4) steps so BlockSpec double-buffering overlaps
        # DMA with compute (and "parallel" steps shard across both v7x TensorCores).
        nb_cap = max(1, N // min(N, 4))
        nb = _largest_divisor_leq(N, min(nb_vmem, nb_cap))
        grid = (N // nb,)

        chunk = _largest_divisor_leq(HWk, 16)
        n_chunks = HWk // chunk

        kernel = _make_single_pass_kernel(C, k, chunk, n_chunks, use_beta)

        in_specs = [pl.BlockSpec((nb, HWk, Ck), lambda i: (i, 0, 0)),
                    pl.BlockSpec((1, Ck), lambda i: (0, 0))]
        inputs = [xr, gamma_r]
        if use_beta:
            in_specs.append(pl.BlockSpec((1, Ck), lambda i: (0, 0)))
            inputs.append(beta_r)

        out = pl.pallas_call(
            kernel,
            out_shape=jax.ShapeDtypeStruct((N, HWk, Ck), x.dtype),
            grid_spec=pltpu.PrefetchScalarGridSpec(
                num_scalar_prefetch=0,
                grid=grid,
                in_specs=in_specs,
                out_specs=pl.BlockSpec((nb, HWk, Ck), lambda i: (i, 0, 0)),
            ),
            compiler_params=pltpu.CompilerParams(
                dimension_semantics=("parallel",),
                vmem_limit_bytes=vmem_limit_bytes,
            ),
        )(*inputs)
        # TODO(synk): for N == 1 (single-step grid) split H*W across both v7x
        # TensorCores; that case currently runs un-pipelined on one core.
    else:
        # ---------------- two pass (reduce, then apply) ----------------
        rows_max = max(1, vmem_budget_bytes // (4 * Ck * itemsize))
        thw = _largest_divisor_leq_mult8(HWk, rows_max)
        n_tiles = HWk // thw
        chunk = _largest_divisor_leq(thw, 16)
        n_chunks = thw // chunk

        reduce_kernel = _make_reduce_kernel(C, k, chunk, n_chunks)
        scale = pl.pallas_call(
            reduce_kernel,
            out_shape=jax.ShapeDtypeStruct((N, 1, Ck), jnp.float32),
            grid_spec=pltpu.PrefetchScalarGridSpec(
                num_scalar_prefetch=0,
                grid=(N, n_tiles),
                in_specs=[pl.BlockSpec((1, thw, Ck), lambda n, t: (n, t, 0)),
                          pl.BlockSpec((1, Ck), lambda n, t: (0, 0))],
                out_specs=pl.BlockSpec((1, 1, Ck), lambda n, t: (n, 0, 0)),
                scratch_shapes=[pltpu.VMEM((1, Ck), jnp.float32)],
            ),
            compiler_params=pltpu.CompilerParams(
                dimension_semantics=("parallel", "arbitrary"),
                vmem_limit_bytes=vmem_limit_bytes,
            ),
        )(xr, gamma_r)

        apply_kernel = _make_apply_kernel(use_beta)
        in_specs = [pl.BlockSpec((1, thw, Ck), lambda n, t: (n, t, 0)),
                    pl.BlockSpec((1, 1, Ck), lambda n, t: (n, 0, 0))]
        inputs = [xr, scale]
        if use_beta:
            in_specs.append(pl.BlockSpec((1, Ck), lambda n, t: (0, 0)))
            inputs.append(beta_r)

        out = pl.pallas_call(
            apply_kernel,
            out_shape=jax.ShapeDtypeStruct((N, HWk, Ck), x.dtype),
            grid_spec=pltpu.PrefetchScalarGridSpec(
                num_scalar_prefetch=0,
                grid=(N, n_tiles),
                in_specs=in_specs,
                out_specs=pl.BlockSpec((1, thw, Ck), lambda n, t: (n, t, 0)),
            ),
            compiler_params=pltpu.CompilerParams(
                dimension_semantics=("parallel", "parallel"),
                vmem_limit_bytes=vmem_limit_bytes,
            ),
        )(*inputs)

    return out.reshape(N, H, W, C)


def grn_reference(x, gamma, beta=None):
    xf = x.astype(jnp.float32)
    gx = jnp.sqrt(jnp.sum(xf * xf, axis=(1, 2), keepdims=True))
    nx = gx / (jnp.mean(gx, axis=-1, keepdims=True) + 1e-6)
    out = (gamma.astype(jnp.float32) * nx + 1.0) * xf
    if beta is not None:
        out = out + beta.astype(jnp.float32)
    return out.astype(x.dtype)


if __name__ == "__main__":
    key = jax.random.PRNGKey(0)
    kx, kg, kb = jax.random.split(key, 3)

    N, H, W, C = 2, 16, 16, 32
    x = jax.random.normal(kx, (N, H, W, C), dtype=jnp.float32)
    # nn.Parameter init in the module is zeros; use small deterministic random values
    # instead so the normalization path is actually exercised.
    gamma = 0.1 * jax.random.normal(kg, (1, 1, 1, C), dtype=jnp.float32)
    beta = 0.1 * jax.random.normal(kb, (1, 1, 1, C), dtype=jnp.float32)

    out = jax.block_until_ready(grn_nhwc(x, gamma, beta))
    ref = grn_reference(x, gamma, beta)
    assert out.shape == (N, H, W, C)
    max_err = float(jnp.max(jnp.abs(out - ref)))
    assert jnp.allclose(out, ref, atol=1e-3, rtol=1e-3), f"mismatch vs reference: {max_err}"

    # use_bias=False variant (no beta input, no beta add in the kernel).
    out_nb = jax.block_until_ready(grn_nhwc(x, gamma, None))
    ref_nb = grn_reference(x, gamma, None)
    max_err_nb = float(jnp.max(jnp.abs(out_nb - ref_nb)))
    assert jnp.allclose(out_nb, ref_nb, atol=1e-3, rtol=1e-3), f"no-bias mismatch: {max_err_nb}"

    print("KERNEL_OK")
</pallas_src>

<mosaic_0001>
module attributes {stable_mosaic.version = 11 : i64} {
  func.func @kernel(%arg0: i32, %arg1: memref<1x64x128xf32, #tpu.memory_space<vmem>>, %arg2: memref<1x128xf32, #tpu.memory_space<vmem>>, %arg3: memref<1x128xf32, #tpu.memory_space<vmem>>, %arg4: memref<1x64x128xf32, #tpu.memory_space<vmem>>) attributes {dimension_semantics = [#tpu.dimension_semantics<parallel>], iteration_bounds = array<i64: 2>, scalar_prefetch = 0 : i64, scratch_operands = 0 : i64, tpu.core_type = #tpu.core_type<tc>, window_params = [{transform_indices = @transform_0, window_bounds = array<i64: 1, 64, 128>}, {pipeline_mode = #tpu.pipeline_mode<synchronous>, transform_indices = @transform_1, window_bounds = array<i64: 1, 128>}, {pipeline_mode = #tpu.pipeline_mode<synchronous>, transform_indices = @transform_2, window_bounds = array<i64: 1, 128>}, {transform_indices = @transform_3, window_bounds = array<i64: 1, 64, 128>}]} {
    %cst = arith.constant 0.000000e+00 : f32
    %0 = vector.broadcast %cst : f32 to vector<1x128xf32>
    %c0_i32 = arith.constant 0 : i32
    %c16_i32 = arith.constant 16 : i32
    %1 = arith.muli %c0_i32, %c16_i32 : i32
    %2 = tpu.assume_multiple %1, 16 : i32
    %c0 = arith.constant 0 : index
    %3 = arith.index_cast %2 : i32 to index
    %c0_0 = arith.constant 0 : index
    %4 = vector.load %arg1[%c0, %3, %c0_0] : memref<1x64x128xf32, #tpu.memory_space<vmem>>, vector<1x16x128xf32>
    %5 = arith.mulf %4, %4 : vector<1x16x128xf32>
    %cst_1 = arith.constant dense<0.000000e+00> : vector<1x128xf32>
    %6 = vector.multi_reduction <add>, %5, %cst_1 [1] : vector<1x16x128xf32> to vector<1x128xf32>
    %7 = arith.addf %0, %6 : vector<1x128xf32>
    %c1_i32 = arith.constant 1 : i32
    %c16_i32_2 = arith.constant 16 : i32
    %8 = arith.muli %c1_i32, %c16_i32_2 : i32
    %9 = tpu.assume_multiple %8, 16 : i32
    %c0_3 = arith.constant 0 : index
    %10 = arith.index_cast %9 : i32 to index
    %c0_4 = arith.constant 0 : index
    %11 = vector.load %arg1[%c0_3, %10, %c0_4] : memref<1x64x128xf32, #tpu.memory_space<vmem>>, vector<1x16x128xf32>
    %12 = arith.mulf %11, %11 : vector<1x16x128xf32>
    %cst_5 = arith.constant dense<0.000000e+00> : vector<1x128xf32>
    %13 = vector.multi_reduction <add>, %12, %cst_5 [1] : vector<1x16x128xf32> to vector<1x128xf32>
    %14 = arith.addf %7, %13 : vector<1x128xf32>
    %c2_i32 = arith.constant 2 : i32
    %c16_i32_6 = arith.constant 16 : i32
    %15 = arith.muli %c2_i32, %c16_i32_6 : i32
    %16 = tpu.assume_multiple %15, 16 : i32
    %c0_7 = arith.constant 0 : index
    %17 = arith.index_cast %16 : i32 to index
    %c0_8 = arith.constant 0 : index
    %18 = vector.load %arg1[%c0_7, %17, %c0_8] : memref<1x64x128xf32, #tpu.memory_space<vmem>>, vector<1x16x128xf32>
    %19 = arith.mulf %18, %18 : vector<1x16x128xf32>
    %cst_9 = arith.constant dense<0.000000e+00> : vector<1x128xf32>
    %20 = vector.multi_reduction <add>, %19, %cst_9 [1] : vector<1x16x128xf32> to vector<1x128xf32>
    %21 = arith.addf %14, %20 : vector<1x128xf32>
    %c3_i32 = arith.constant 3 : i32
    %c16_i32_10 = arith.constant 16 : i32
    %22 = arith.muli %c3_i32, %c16_i32_10 : i32
    %23 = tpu.assume_multiple %22, 16 : i32
    %c0_11 = arith.constant 0 : index
    %24 = arith.index_cast %23 : i32 to index
    %c0_12 = arith.constant 0 : index
    %25 = vector.load %arg1[%c0_11, %24, %c0_12] : memref<1x64x128xf32, #tpu.memory_space<vmem>>, vector<1x16x128xf32>
    %26 = arith.mulf %25, %25 : vector<1x16x128xf32>
    %cst_13 = arith.constant dense<0.000000e+00> : vector<1x128xf32>
    %27 = vector.multi_reduction <add>, %26, %cst_13 [1] : vector<1x16x128xf32> to vector<1x128xf32>
    %28 = arith.addf %21, %27 : vector<1x128xf32>
    %c4_i32 = arith.constant 4 : i32
    %c32_i32 = arith.constant 32 : i32
    %29 = tpu.dynamic_rotate %28 by %c32_i32 dim 1 : vector<1x128xf32>, i32 -> vector<1x128xf32>
    %30 = arith.addf %28, %29 : vector<1x128xf32>
    %c64_i32 = arith.constant 64 : i32
    %31 = tpu.dynamic_rotate %28 by %c64_i32 dim 1 : vector<1x128xf32>, i32 -> vector<1x128xf32>
    %32 = arith.addf %30, %31 : vector<1x128xf32>
    %c96_i32 = arith.constant 96 : i32
    %33 = tpu.dynamic_rotate %28 by %c96_i32 dim 1 : vector<1x128xf32>, i32 -> vector<1x128xf32>
    %34 = arith.addf %32, %33 : vector<1x128xf32>
    %35 = math.sqrt %34 : vector<1x128xf32>
    %cst_14 = arith.constant dense<0.000000e+00> : vector<1xf32>
    %36 = vector.multi_reduction <add>, %35, %cst_14 [1] : vector<1x128xf32> to vector<1xf32>
    %37 = vector.shape_cast %36 : vector<1xf32> to vector<1x1xf32>
    %cst_15 = arith.constant 7.812500e-03 : f32
    %38 = vector.broadcast %cst_15 : f32 to vector<1x1xf32>
    %39 = arith.mulf %37, %38 : vector<1x1xf32>
    %cst_16 = arith.constant 9.99999997E-7 : f32
    %40 = vector.broadcast %cst_16 : f32 to vector<1x1xf32>
    %41 = arith.addf %39, %40 : vector<1x1xf32>
    %42 = vector.broadcast %41 : vector<1x1xf32> to vector<1x128xf32>
    %43 = arith.divf %35, %42 : vector<1x128xf32>
    %c0_17 = arith.constant 0 : index
    %c0_18 = arith.constant 0 : index
    %44 = vector.load %arg2[%c0_17, %c0_18] : memref<1x128xf32, #tpu.memory_space<vmem>>, vector<1x128xf32>
    %45 = arith.mulf %44, %43 : vector<1x128xf32>
    %cst_19 = arith.constant 1.000000e+00 : f32
    %46 = vector.broadcast %cst_19 : f32 to vector<1x128xf32>
    %47 = arith.addf %45, %46 : vector<1x128xf32>
    %c0_20 = arith.constant 0 : index
    %c0_21 = arith.constant 0 : index
    %48 = vector.load %arg3[%c0_20, %c0_21] : memref<1x128xf32, #tpu.memory_space<vmem>>, vector<1x128xf32>
    %c0_i32_22 = arith.constant 0 : i32
    %c16_i32_23 = arith.constant 16 : i32
    %49 = arith.muli %c0_i32_22, %c16_i32_23 : i32
    %50 = tpu.assume_multiple %49, 16 : i32
    %c0_24 = arith.constant 0 : index
    %51 = arith.index_cast %50 : i32 to index
    %c0_25 = arith.constant 0 : index
    %52 = vector.load %arg1[%c0_24, %51, %c0_25] : memref<1x64x128xf32, #tpu.memory_space<vmem>>, vector<1x16x128xf32>
    %53 = vector.shape_cast %47 : vector<1x128xf32> to vector<1x1x128xf32>
    %54 = vector.broadcast %53 : vector<1x1x128xf32> to vector<1x16x128xf32>
    %55 = arith.mulf %54, %52 : vector<1x16x128xf32>
    %56 = vector.shape_cast %48 : vector<1x128xf32> to vector<1x1x128xf32>
    %57 = vector.broadcast %56 : vector<1x1x128xf32> to vector<1x16x128xf32>
    %58 = arith.addf %55, %57 : vector<1x16x128xf32>
    %c0_26 = arith.constant 0 : index
    %59 = arith.index_cast %50 : i32 to index
    %c0_27 = arith.constant 0 : index
    %60 = vector.load %arg4[%c0_26, %59, %c0_27] : memref<1x64x128xf32, #tpu.memory_space<vmem>>, vector<1x16x128xf32>
    tpu.vector_store %arg4[%c0_26, %59, %c0_27], %58 {strides = array<i32>} : memref<1x64x128xf32, #tpu.memory_space<vmem>>, vector<1x16x128xf32>,
    %c1_i32_28 = arith.constant 1 : i32
    %c16_i32_29 = arith.constant 16 : i32
    %61 = arith.muli %c1_i32_28, %c16_i32_29 : i32
    %62 = tpu.assume_multiple %61, 16 : i32
    %c0_30 = arith.constant 0 : index
    %63 = arith.index_cast %62 : i32 to index
    %c0_31 = arith.constant 0 : index
    %64 = vector.load %arg1[%c0_30, %63, %c0_31] : memref<1x64x128xf32, #tpu.memory_space<vmem>>, vector<1x16x128xf32>
    %65 = vector.shape_cast %47 : vector<1x128xf32> to vector<1x1x128xf32>
    %66 = vector.broadcast %65 : vector<1x1x128xf32> to vector<1x16x128xf32>
    %67 = arith.mulf %66, %64 : vector<1x16x128xf32>
    %68 = vector.shape_cast %48 : vector<1x128xf32> to vector<1x1x128xf32>
    %69 = vector.broadcast %68 : vector<1x1x128xf32> to vector<1x16x128xf32>
    %70 = arith.addf %67, %69 : vector<1x16x128xf32>
    %c0_32 = arith.constant 0 : index
    %71 = arith.index_cast %62 : i32 to index
    %c0_33 = arith.constant 0 : index
    %72 = vector.load %arg4[%c0_32, %71, %c0_33] : memref<1x64x128xf32, #tpu.memory_space<vmem>>, vector<1x16x128xf32>
    tpu.vector_store %arg4[%c0_32, %71, %c0_33], %70 {strides = array<i32>} : memref<1x64x128xf32, #tpu.memory_space<vmem>>, vector<1x16x128xf32>,
    %c2_i32_34 = arith.constant 2 : i32
    %c16_i32_35 = arith.constant 16 : i32
    %73 = arith.muli %c2_i32_34, %c16_i32_35 : i32
    %74 = tpu.assume_multiple %73, 16 : i32
    %c0_36 = arith.constant 0 : index
    %75 = arith.index_cast %74 : i32 to index
    %c0_37 = arith.constant 0 : index
    %76 = vector.load %arg1[%c0_36, %75, %c0_37] : memref<1x64x128xf32, #tpu.memory_space<vmem>>, vector<1x16x128xf32>
    %77 = vector.shape_cast %47 : vector<1x128xf32> to vector<1x1x128xf32>
    %78 = vector.broadcast %77 : vector<1x1x128xf32> to vector<1x16x128xf32>
    %79 = arith.mulf %78, %76 : vector<1x16x128xf32>
    %80 = vector.shape_cast %48 : vector<1x128xf32> to vector<1x1x128xf32>
    %81 = vector.broadcast %80 : vector<1x1x128xf32> to vector<1x16x128xf32>
    %82 = arith.addf %79, %81 : vector<1x16x128xf32>
    %c0_38 = arith.constant 0 : index
    %83 = arith.index_cast %74 : i32 to index
    %c0_39 = arith.constant 0 : index
    %84 = vector.load %arg4[%c0_38, %83, %c0_39] : memref<1x64x128xf32, #tpu.memory_space<vmem>>, vector<1x16x128xf32>
    tpu.vector_store %arg4[%c0_38, %83, %c0_39], %82 {strides = array<i32>} : memref<1x64x128xf32, #tpu.memory_space<vmem>>, vector<1x16x128xf32>,
    %c3_i32_40 = arith.constant 3 : i32
    %c16_i32_41 = arith.constant 16 : i32
    %85 = arith.muli %c3_i32_40, %c16_i32_41 : i32
    %86 = tpu.assume_multiple %85, 16 : i32
    %c0_42 = arith.constant 0 : index
    %87 = arith.index_cast %86 : i32 to index
    %c0_43 = arith.constant 0 : index
    %88 = vector.load %arg1[%c0_42, %87, %c0_43] : memref<1x64x128xf32, #tpu.memory_space<vmem>>, vector<1x16x128xf32>
    %89 = vector.shape_cast %47 : vector<1x128xf32> to vector<1x1x128xf32>
    %90 = vector.broadcast %89 : vector<1x1x128xf32> to vector<1x16x128xf32>
    %91 = arith.mulf %90, %88 : vector<1x16x128xf32>
    %92 = vector.shape_cast %48 : vector<1x128xf32> to vector<1x1x128xf32>
    %93 = vector.broadcast %92 : vector<1x1x128xf32> to vector<1x16x128xf32>
    %94 = arith.addf %91, %93 : vector<1x16x128xf32>
    %c0_44 = arith.constant 0 : index
    %95 = arith.index_cast %86 : i32 to index
    %c0_45 = arith.constant 0 : index
    %96 = vector.load %arg4[%c0_44, %95, %c0_45] : memref<1x64x128xf32, #tpu.memory_space<vmem>>, vector<1x16x128xf32>
    tpu.vector_store %arg4[%c0_44, %95, %c0_45], %94 {strides = array<i32>} : memref<1x64x128xf32, #tpu.memory_space<vmem>>, vector<1x16x128xf32>,
    %c4_i32_46 = arith.constant 4 : i32
    return
  }
  func.func @transform_0(%arg0: i32) -> (i32, i32, i32) {
    %c0_i32 = arith.constant 0 : i32
    %c0_i32_0 = arith.constant 0 : i32
    %c0_i32_1 = arith.constant 0 : i32
    return %arg0, %c0_i32, %c0_i32_0 : i32, i32, i32
  }
  func.func @transform_1(%arg0: i32) -> (i32, i32) {
    %c0_i32 = arith.constant 0 : i32
    %c0_i32_0 = arith.constant 0 : i32
    %c0_i32_1 = arith.constant 0 : i32
    return %c0_i32, %c0_i32_0 : i32, i32
  }
  func.func @transform_2(%arg0: i32) -> (i32, i32) {
    %c0_i32 = arith.constant 0 : i32
    %c0_i32_0 = arith.constant 0 : i32
    %c0_i32_1 = arith.constant 0 : i32
    return %c0_i32, %c0_i32_0 : i32, i32
  }
  func.func @transform_3(%arg0: i32) -> (i32, i32, i32) {
    %c0_i32 = arith.constant 0 : i32
    %c0_i32_0 = arith.constant 0 : i32
    %c0_i32_1 = arith.constant 0 : i32
    return %arg0, %c0_i32, %c0_i32_0 : i32, i32, i32
  }
}

</mosaic_0001>

<llo_original>
// kernel: tpu_custom_call.1
$region0: #{tpu_custom_call.1}
  #allocation0 [shape = 'u32[]', space=smem, size = 0x4, offset = 0x4, fixed_abs, tag = 'smem constant byte address 0x4 - core index']
  #allocation1 [shape = 'u32[72,128]{1,0:T(1,128)}', space=vmem, size = 0x9000, scoped, tag = 'internal scratch']
  %s0 = inlined_call_operand.hbm [shape: f32[2,64,128], index: 0, kind: input, shape index: {}]
  %s1 = inlined_call_operand.hbm [shape: f32[1,128], index: 1, kind: input, shape index: {}]
  %s2 = inlined_call_operand.vmem [shape: f32[1,128], index: 2, kind: input, shape index: {}]
  %s3 = inlined_call_operand.hbm [shape: f32[2,64,128], index: 3, kind: output, shape index: {}]
  %s4 = sld [smem:[#allocation0]]
  $region53: #{tpu_custom_call.1} parent=0
    _
  %s6 = ssub.s32 1, %s4
  %s7 = scalar_select 0, %s6, %s4
  $region1: #{tpu_custom_call.1} parent=0
    #allocation2 [shape = 'u8[65536]{0}', space=vmem, size = 0x10000, scoped, tag = 'input window, operand 0']
    #allocation3 [shape = 's32[2]{0}', space=sflag, size = 0x8, scoped, tag = 'scoped memory for tpu_custom_call.1']
    #allocation4 [shape = 's32[2]{0}', space=sflag, size = 0x8, scoped, tag = 'scoped memory for tpu_custom_call.1']
    #allocation5 [shape = 'u8[512]{0}', space=vmem, size = 0x400, scoped, tag = 'input window, operand 1, single buffered']
    #allocation6 [shape = 's32[1]{0}', space=sflag, size = 0x4, scoped, tag = 'scoped memory for tpu_custom_call.1']
    #allocation7 [shape = 'u8[65536]{0}', space=vmem, size = 0x10000, scoped, tag = 'output window, operand 0']
    %8 = vsyncpa [#allocation3], 0
    %s9 = scalar_lea.sflag [#allocation3], 1
    %10 = vsyncpa %s9, 0
    %11 = vsyncpa [#allocation6], 0
    %12 = vsyncpa [#allocation4], 0
    %s13 = scalar_lea.sflag [#allocation4], 1
    %14 = vsyncpa %s13, 0
    loop: start=0, step=1, limit=4
    $region2: #{tpu_custom_call.1} parent=1 // loop_pre_header
      _
    $region3: #{tpu_custom_call.1} parent=1 // loop_header
      %s16 = sphi 0, %s20
      %p17 = scmp.ge.s32.totalorder %s16, 4
      %s26 = sphi 0, %s28
      %s29 = sphi 0, %s26
      %s30 = sphi 0, %s29
      %s46 = sphi 0, %s30
      %s50 = sphi 0, %s50
      %s52 = sphi 0, %s50
      %s53 = sphi 0, %s52
      %s67 = sphi 0, %s53
      %s71 = sphi 0, %s71
      %s73 = sphi 0, %s71
      %s74 = sphi 0, %s73
      %s88 = sphi 0, %s74
      %s94 = sphi 0, %s96
      %s97 = sphi 0, %s94
      %s98 = sphi 0, %s97
      %s114 = sphi 0, %s98
    $region4: #{tpu_custom_call.1} parent=1 // loop_header_branch
      %19 = sbr.rel (%p17) target = $region8
    $region5: #{tpu_custom_call.1} parent=1 // loop_body
      %s21 = ssub.s32 %s16, 1
      %s22 = ssub.s32 %s16, 2
      %s23 = sadd.s32 %s16, 1
      %s24 = ssub.s32 %s16, %s23
      %p25 = scmp.eq.s32.totalorder %s24, 0
      %s27 = sadd.s32 %s26, 1
      %s28 = scalar_select %p25, %s26, %s27
      %p31 = pneg %p25
      %p32 = scmp.eq.s32.totalorder %s16, 1
      %p33 = por %p31, %p32
      %p34 = scmp.ne.s32.totalorder %s26, %s29
      %p35 = scmp.eq.s32.totalorder %s16, 0
      %p36 = por %p34, %p35
      %p37 = scmp.ne.s32.totalorder %s26, %s29
      %p38 = scmp.eq.s32.totalorder %s21, 1
      %p39 = por %p37, %p38
      %p40 = scmp.ne.s32.totalorder %s29, %s30
      %p41 = scmp.eq.s32.totalorder %s21, 0
      %p42 = por %p40, %p41
      %p43 = scmp.ne.s32.totalorder %s29, %s30
      %p44 = scmp.eq.s32.totalorder %s22, 1
      %p45 = por %p43, %p44
      %p47 = scmp.ne.s32.totalorder %s30, %s46
      %p48 = scmp.eq.s32.totalorder %s22, 0
      %p49 = por %p47, %p48
      %s51 = sadd.s32 %s50, 1
      %p54 = scmp.eq.s32.totalorder %s16, 1
      %p55 = scmp.ne.s32.totalorder %s50, %s52
      %p56 = scmp.eq.s32.totalorder %s16, 0
      %p57 = por %p55, %p56
      %p58 = scmp.ne.s32.totalorder %s50, %s52
      %p59 = scmp.eq.s32.totalorder %s21, 1
      %p60 = por %p58, %p59
      %p61 = scmp.ne.s32.totalorder %s52, %s53
      %p62 = scmp.eq.s32.totalorder %s21, 0
      %p63 = por %p61, %p62
      %p64 = scmp.ne.s32.totalorder %s52, %s53
      %p65 = scmp.eq.s32.totalorder %s22, 1
      %p66 = por %p64, %p65
      %p68 = scmp.ne.s32.totalorder %s53, %s67
      %p69 = scmp.eq.s32.totalorder %s22, 0
      %p70 = por %p68, %p69
      %s72 = sadd.s32 %s71, 1
      %p75 = scmp.eq.s32.totalorder %s16, 1
      %p76 = scmp.ne.s32.totalorder %s71, %s73
      %p77 = scmp.eq.s32.totalorder %s16, 0
      %p78 = por %p76, %p77
      %p79 = scmp.ne.s32.totalorder %s71, %s73
      %p80 = scmp.eq.s32.totalorder %s21, 1
      %p81 = por %p79, %p80
      %p82 = scmp.ne.s32.totalorder %s73, %s74
      %p83 = scmp.eq.s32.totalorder %s21, 0
      %p84 = por %p82, %p83
      %p85 = scmp.ne.s32.totalorder %s73, %s74
      %p86 = scmp.eq.s32.totalorder %s22, 1
      %p87 = por %p85, %p86
      %p89 = scmp.ne.s32.totalorder %s74, %s88
      %p90 = scmp.eq.s32.totalorder %s22, 0
      %p91 = por %p89, %p90
      %s92 = ssub.s32 %s16, %s23
      %p93 = scmp.eq.s32.totalorder %s92, 0
      %s95 = sadd.s32 %s94, 1
      %s96 = scalar_select %p93, %s94, %s95
      %p99 = pneg %p93
      %p100 = scmp.eq.s32.totalorder %s16, 1
      %p101 = por %p99, %p100
      %p102 = scmp.ne.s32.totalorder %s94, %s97
      %p103 = scmp.eq.s32.totalorder %s16, 0
      %p104 = por %p102, %p103
      %p105 = scmp.ne.s32.totalorder %s94, %s97
      %p106 = scmp.eq.s32.totalorder %s21, 1
      %p107 = por %p105, %p106
      %p108 = scmp.ne.s32.totalorder %s97, %s98
      %p109 = scmp.eq.s32.totalorder %s21, 0
      %p110 = por %p108, %p109
      %p111 = scmp.ne.s32.totalorder %s97, %s98
      %p112 = scmp.eq.s32.totalorder %s22, 1
      %p113 = por %p111, %p112
      %p115 = scmp.ne.s32.totalorder %s98, %s114
      %p116 = scmp.eq.s32.totalorder %s22, 0
      %p117 = por %p115, %p116
      %p118 = scmp.le.s32.totalorder 1, %s16
      %p119 = scmp.lt.s32.totalorder %s16, 3
      %p120 = pnand %p118, %p119
      %p121 = pneg %p120
      // Predicated region
      $region9: #{tpu_custom_call.1} parent=5 // pred_check
        _
      $region10: #{tpu_custom_call.1} parent=5 // pred_check_branch
        %123 = sbr.rel (%p120) target = $region12
      $region11: #{tpu_custom_call.1} parent=5 // pred_region
        %s124 = ssub.s32 %s16, 1
        // Predicated region
        $region13: #{tpu_custom_call.1} parent=11 // pred_check
          %p125 = pneg %p63
        $region14: #{tpu_custom_call.1} parent=11 // pred_check_branch
          %127 = sbr.rel (%p125) target = $region16
        $region15: #{tpu_custom_call.1} parent=11 // pred_region
          %129 = vsyncadd [#allocation6], 0
          %s131 = sshll.u32 %s1, 4
          %s132 = int_to_ptr.hbm [resolvable:$true] %s131
          %s133 = sshll.u32 [#allocation5], 4
          %s134 = int_to_ptr.vmem [resolvable:$true] %s133
          %136 = dma.hbm_to_vmem [thread:$0]  %s132, 16, %s134, [#allocation6]
        $region16: #{tpu_custom_call.1} parent=11 // pred_fallthru
          _
        // Predicated region
        $region17: #{tpu_custom_call.1} parent=11 // pred_check
          %p137 = pneg %p84
        $region18: #{tpu_custom_call.1} parent=11 // pred_check_branch
          %139 = sbr.rel (%p137) target = $region20
        $region19: #{tpu_custom_call.1} parent=11 // pred_region
          _
        $region20: #{tpu_custom_call.1} parent=11 // pred_fallthru
          _
      $region12: #{tpu_custom_call.1} parent=5 // pred_fallthru
        _
      %p140 = scmp.lt.s32.totalorder %s16, 2
      // Predicated region
      $region21: #{tpu_custom_call.1} parent=5 // pred_check
        %p141 = pneg %p140
      $region22: #{tpu_custom_call.1} parent=5 // pred_check_branch
        %143 = sbr.rel (%p141) target = $region24
      $region23: #{tpu_custom_call.1} parent=5 // pred_region
        // Predicated region
        $region25: #{tpu_custom_call.1} parent=23 // pred_check
          %p144 = pneg %p36
        $region26: #{tpu_custom_call.1} parent=23 // pred_check_branch
          %146 = sbr.rel (%p144) target = $region28
        $region27: #{tpu_custom_call.1} parent=23 // pred_region
          %s147 = sand.u32 %s26, 1
          %s148 = scalar_lea.sflag [#allocation3], %s147
          %s149 = sand.u32 %s26, 1
          %s150 = smul.addr %s149, 64
          %s151 = scalar_lea.vmem [#allocation2], %s150
          %153 = vsyncadd %s148, 0
          %s154 = smul.addr %s16, 8
          %s155 = smul.addr %s154, 8
          %s156 = scalar_lea.hbm %s0, %s155
          %s157 = sshll.u32 %s156, 4
          %s158 = int_to_ptr.hbm [resolvable:$true] %s157
          %s159 = sshll.u32 %s151, 4
          %s160 = int_to_ptr.vmem [resolvable:$true] %s159
          %165 = dma.hbm_to_vmem [thread:$0]  %s158, 1024, %s160, %s148, 128, 128, 8
        $region28: #{tpu_custom_call.1} parent=23 // pred_fallthru
          _
      $region24: #{tpu_custom_call.1} parent=5 // pred_fallthru
        _
      %p166 = scmp.le.s32.totalorder 1, %s16
      %p167 = scmp.lt.s32.totalorder %s16, 3
      %p168 = pnand %p166, %p167
      %p169 = pneg %p168
      // Predicated region
      $region29: #{tpu_custom_call.1} parent=5 // pred_check
        _
      $region30: #{tpu_custom_call.1} parent=5 // pred_check_branch
        %171 = sbr.rel (%p168) target = $region32
      $region31: #{tpu_custom_call.1} parent=5 // pred_region
        %s172 = ssub.s32 %s16, 1
        %s173 = sand.u32 %s29, 1
        %s174 = scalar_lea.sflag [#allocation3], %s173
        %s175 = sand.u32 %s29, 1
        %s176 = smul.addr %s175, 64
        %s177 = scalar_lea.vmem [#allocation2], %s176
        // Predicated region
        $region33: #{tpu_custom_call.1} parent=31 // pred_check
          %p178 = pneg %p42
        $region34: #{tpu_custom_call.1} parent=31 // pred_check_branch
          %180 = sbr.rel (%p178) target = $region36
        $region35: #{tpu_custom_call.1} parent=31 // pred_region
          %182 = dma.done %s174, 1024
        $region36: #{tpu_custom_call.1} parent=31 // pred_fallthru
          _
        // Predicated region
        $region37: #{tpu_custom_call.1} parent=31 // pred_check
          %p183 = pneg %p63
        $region38: #{tpu_custom_call.1} parent=31 // pred_check_branch
          %185 = sbr.rel (%p183) target = $region40
        $region39: #{tpu_custom_call.1} parent=31 // pred_region
          %187 = dma.done [#allocation6], 16
        $region40: #{tpu_custom_call.1} parent=31 // pred_fallthru
          _
        %s188 = sand.u32 %s29, 1
        %s189 = scalar_lea.sflag [#allocation3], %s188
        %s190 = sand.u32 %s29, 1
        %s191 = smul.addr %s190, 64
        %s192 = scalar_lea.vmem [#allocation2], %s191
        %p193 = pneg %p42
        %p194 = pneg %p39
        %p195 = pneg %p63
        %p196 = pneg %p60
        %p197 = pneg %p84
        %p198 = pneg %p81
        %p199 = pneg %p110
        %p200 = pneg %p107
        %s201 = sand.u32 %s97, 1
        %s202 = scalar_lea.sflag [#allocation4], %s201
        %s203 = sand.u32 %s97, 1
        %s204 = smul.addr %s203, 64
        %s205 = scalar_lea.vmem [#allocation7], %s204
        %v206 = vld [vmem:[%s177] sm:$0xff]
        %v207 = vld [vmem:[%s177 + $0x8] sm:$0xff]
        %v208 = vmul.f32 %v206, %v206
        %v209 = vmul.f32 %v207, %v207
        %v210 = vadd.f32 %v208, %v209
        %v211 = vrot.slane %v210, 4
        %v212 = vadd.f32 %v210, %v211
        %v213 = vrot.slane %v212, 2
        %v214 = vadd.f32 %v212, %v213
        %v215 = vrot.slane %v214, 1
        %v216 = vadd.f32 %v214, %v215
        %v217 = vadd.f32 %v216, 0.0
        %s218 = scalar_lea.vmem %s177, 16 [#allocation2]
        %v219 = vld [vmem:[%s218] sm:$0xff]
        %v220 = vld [vmem:[%s218 + $0x8] sm:$0xff]
        %v221 = vmul.f32 %v219, %v219
        %v222 = vmul.f32 %v220, %v220
        %v223 = vadd.f32 %v221, %v222
        %v224 = vrot.slane %v223, 4
        %v225 = vadd.f32 %v223, %v224
        %v226 = vrot.slane %v225, 2
        %v227 = vadd.f32 %v225, %v226
        %v228 = vrot.slane %v227, 1
        %v229 = vadd.f32 %v227, %v228
        %v230 = vadd.f32 %v217, %v229
        %s231 = scalar_lea.vmem %s177, 32 [#allocation2]
        %v232 = vld [vmem:[%s231] sm:$0xff]
        %v233 = vld [vmem:[%s231 + $0x8] sm:$0xff]
        %v234 = vmul.f32 %v232, %v232
        %v235 = vmul.f32 %v233, %v233
        %v236 = vadd.f32 %v234, %v235
        %v237 = vrot.slane %v236, 4
        %v238 = vadd.f32 %v236, %v237
        %v239 = vrot.slane %v238, 2
        %v240 = vadd.f32 %v238, %v239
        %v241 = vrot.slane %v240, 1
        %v242 = vadd.f32 %v240, %v241
        %v243 = vadd.f32 %v230, %v242
        %s244 = scalar_lea.vmem %s177, 48 [#allocation2]
        %v245 = vld [vmem:[%s244] sm:$0xff]
        %v246 = vld [vmem:[%s244 + $0x8] sm:$0xff]
        %v247 = vmul.f32 %v245, %v245
        %v248 = vmul.f32 %v246, %v246
        %v249 = vadd.f32 %v247, %v248
        %v250 = vrot.slane %v249, 4
        %v251 = vadd.f32 %v249, %v250
        %v252 = vrot.slane %v251, 2
        %v253 = vadd.f32 %v251, %v252
        %v254 = vrot.slane %v253, 1
        %v255 = vadd.f32 %v253, %v254
        %v256 = vadd.f32 %v243, %v255
        %257 = vrot.lane.b32.xlu0 %v256, 32
        %v258 = vpop.permute.xlu0 %257
        %v259 = vadd.f32 %v256, %v258
        %260 = vrot.lane.b32.xlu0 %v256, 64
        %v261 = vpop.permute.xlu0 %260
        %v262 = vadd.f32 %v259, %v261
        %263 = vrot.lane.b32.xlu0 %v256, 96
        %v264 = vpop.permute.xlu0 %263
        %v265 = vadd.f32 %v262, %v264
        %v266 = vrsqrt.pop %v265
        %v267 = vmul.f32 %v266, %v265
        %v268 = vmul.f32 %v267, %v266
        %v269 = vmul.f32 0.5, %v268
        %v270 = vsub.f32 1.5, %v269
        %v271 = vmul.f32 %v266, %v270
        %v272 = vmul.f32 %v265, %v271
        %vm273 = vcmp.eq.f32.partialorder %v265, inf
        %v274 = vsel %vm273, %v265, %v272
        %vm275 = vcmp.eq.f32.partialorder %v265, 0.0
        %v276 = vand.u32 %v265, 2147483648
        %v277 = vsel %vm275, %v276, %v274
        %vm278 = vcmask 1040384
        %v279 = vsel %vm278, %v277, 0.0
        %280 = vadd.xlane.f32.xlu0 %v279
        %v281 = vpop.xlane.xlu0 %280
        %v282 = vmul.f32 %v281, 0.0078125
        %v283 = vadd.f32 %v282, 1e-06
        %v284 = vrcp.pop %v283
        %v285 = vmul.f32 %v283, %v284
        %v286 = vsub.f32 1.0, %v285
        %v287 = vmul.f32 %v284, %v286
        %v288 = vadd.f32 %v284, %v287
        %vm289 = vweird.f32 %v283
        %vm290 = vweird.f32 %v284
        %vm291 = vmor %vm289, %vm290
        %v292 = vsel %vm291, %v284, %v288
        %v293 = vand.u32 2147483647, %v283
        %vm294 = vcmp.eq.f32.partialorder %v293, 8.507059e+37
        %v295 = vand.u32 %v283, 2147483648
        %v296 = vor.u32 1.1754944e-38, %v295
        %v297 = vsel %vm294, %v296, %v292
        %v298 = vmul.f32 %v277, %v297
        %v299 = vld [vmem:[#allocation5] sm:$0x1]
        %v300 = vmul.f32 %v299, %v298
        %v301 = vadd.f32 %v300, 1.0
        %v302 = vld [vmem:[%s2] sm:$0x1]
        %v304 = vperm.slane %v301, 0
        %v306 = vmul.f32 %v304, %v206
        %v307 = vmul.f32 %v304, %v207
        %v309 = vperm.slane %v302, 0
        %v311 = vadd.f32 %v306, %v309
        %v312 = vadd.f32 %v307, %v309
        %313 = vst [vmem:[%s205] sm:$0xff] %v311
        %314 = vst [vmem:[%s205 + $0x8] sm:$0xff] %v312
        %v315 = vld [vmem:[%s218] sm:$0xff]
        %v316 = vld [vmem:[%s218 + $0x8] sm:$0xff]
        %v317 = vmul.f32 %v304, %v315
        %v318 = vmul.f32 %v304, %v316
        %v319 = vadd.f32 %v317, %v309
        %v320 = vadd.f32 %v318, %v309
        %s321 = scalar_lea.vmem %s205, 16 [#allocation7]
        %322 = vst [vmem:[%s321] sm:$0xff] %v319
        %323 = vst [vmem:[%s321 + $0x8] sm:$0xff] %v320
        %v324 = vld [vmem:[%s231] sm:$0xff]
        %v325 = vld [vmem:[%s231 + $0x8] sm:$0xff]
        %v326 = vmul.f32 %v304, %v324
        %v327 = vmul.f32 %v304, %v325
        %v328 = vadd.f32 %v326, %v309
        %v329 = vadd.f32 %v327, %v309
        %s330 = scalar_lea.vmem %s205, 32 [#allocation7]
        %331 = vst [vmem:[%s330] sm:$0xff] %v328
        %332 = vst [vmem:[%s330 + $0x8] sm:$0xff] %v329
        %v333 = vld [vmem:[%s244] sm:$0xff]
        %v334 = vld [vmem:[%s244 + $0x8] sm:$0xff]
        %v335 = vmul.f32 %v304, %v333
        %v336 = vmul.f32 %v304, %v334
        %v337 = vadd.f32 %v335, %v309
        %v338 = vadd.f32 %v336, %v309
        %s339 = scalar_lea.vmem %s205, 48 [#allocation7]
        %340 = vst [vmem:[%s339] sm:$0xff] %v337
        %341 = vst [vmem:[%s339 + $0x8] sm:$0xff] %v338
        %s342 = sand.u32 %s97, 1
        %s343 = scalar_lea.sflag [#allocation4], %s342
        %s344 = sand.u32 %s97, 1
        %s345 = smul.addr %s344, 64
        %s346 = scalar_lea.vmem [#allocation7], %s345
        // Predicated region
        $region41: #{tpu_custom_call.1} parent=31 // pred_check
          %p347 = pneg %p107
        $region42: #{tpu_custom_call.1} parent=31 // pred_check_branch
          %349 = sbr.rel (%p347) target = $region44
        $region43: #{tpu_custom_call.1} parent=31 // pred_region
          %351 = vsyncadd %s343, 0
          %s352 = smul.addr %s21, 8
          %s353 = smul.addr %s352, 8
          %s354 = scalar_lea.hbm %s3, %s353
          %s355 = sshll.u32 %s346, 4
          %s356 = int_to_ptr.vmem [resolvable:$true] %s355
          %s357 = sshll.u32 %s354, 4
          %s358 = int_to_ptr.hbm [resolvable:$true] %s357
          %363 = dma.vmem_to_hbm [thread:$0]  %s356, 1024, %s358, %s343, 128, 128, 8
        $region44: #{tpu_custom_call.1} parent=31 // pred_fallthru
          _
      $region32: #{tpu_custom_call.1} parent=5 // pred_fallthru
        _
      %p364 = scmp.le.s32.totalorder 2, %s16
      // Predicated region
      $region45: #{tpu_custom_call.1} parent=5 // pred_check
        %p365 = pneg %p364
      $region46: #{tpu_custom_call.1} parent=5 // pred_check_branch
        %367 = sbr.rel (%p365) target = $region48
      $region47: #{tpu_custom_call.1} parent=5 // pred_region
        %s368 = ssub.s32 %s16, 2
        // Predicated region
        $region49: #{tpu_custom_call.1} parent=47 // pred_check
          %p369 = pneg %p113
        $region50: #{tpu_custom_call.1} parent=47 // pred_check_branch
          %371 = sbr.rel (%p369) target = $region52
        $region51: #{tpu_custom_call.1} parent=47 // pred_region
          %s372 = sand.u32 %s98, 1
          %s373 = scalar_lea.sflag [#allocation4], %s372
          %s374 = sand.u32 %s98, 1
          %s375 = smul.addr %s374, 64
          %s376 = scalar_lea.vmem [#allocation7], %s375
          %378 = dma.done %s373, 1024
        $region52: #{tpu_custom_call.1} parent=47 // pred_fallthru
          _
      $region48: #{tpu_custom_call.1} parent=5 // pred_fallthru
        _
    $region6: #{tpu_custom_call.1} parent=1 // loop_footer
      %s20 = sadd.s32 1, %s16
    $region7: #{tpu_custom_call.1} parent=1 // loop_footer_branch
      %15 = sbr.rel target = $region3
    $region8: #{tpu_custom_call.1} parent=1 // loop_exit
      _
    %379 = vsyncpa [#allocation3], 1
    %s380 = scalar_lea.sflag [#allocation3], 1
    %381 = vsyncpa %s380, 1
    %382 = vsyncpa [#allocation6], 1
    %383 = vsyncpa [#allocation4], 1
    %s384 = scalar_lea.sflag [#allocation4], 1
    %385 = vsyncpa %s384, 1

</llo_original>
